<compile_context>
chip_gen: v6e
topology: v6e:2x2x1
jax: 0.10.0
libtpu: 0.0.40
codegen_flags: <defaults>
</compile_context>

<pallas_src>
import math
import functools

import jax
import jax.numpy as jnp
from jax.experimental import pallas as pl
from jax.experimental.pallas import tpu as pltpu


# --------------------------------------------------------------------- helpers
def _round_up(x, m):
    return ((x + m - 1) // m) * m


def _pick_tile(n, pref):
    """Largest tile <= pref that evenly divides n; fall back to the full dim."""
    for t in (pref, 1024, 512, 256, 128, 64, 32, 16, 8):
        if t <= pref and t <= n and n % t == 0:
            return t
    return n


@functools.lru_cache(maxsize=1)
def _vmem_limit_bytes():
    """Per-generation VMEM budget with headroom (v5e/v6e 128 MiB, v7x 64 MiB)."""
    cap = 64 * 1024 * 1024
    try:
        info = pltpu.get_tpu_info()
        cap = int(getattr(info, "vmem_capacity_bytes", cap) or cap)
    except Exception:
        pass
    return int(min(cap * 0.7, 96 * 1024 * 1024))


# ---------------------------------------------------------------------- linear
def _linear_resident_bias_kernel(x_ref, w_ref, b_ref, o_ref):
    acc = jnp.dot(x_ref[...], w_ref[...], preferred_element_type=jnp.float32)
    o_ref[...] = (acc + b_ref[...].astype(jnp.float32)).astype(o_ref.dtype)


def _linear_resident_kernel(x_ref, w_ref, o_ref):
    o_ref[...] = jnp.dot(x_ref[...], w_ref[...],
                         preferred_element_type=jnp.float32).astype(o_ref.dtype)


def _linear_tiled_bias_kernel(x_ref, w_ref, b_ref, o_ref, acc_ref):
    k = pl.program_id(2)

    @pl.when(k == 0)
    def _():
        acc_ref[...] = jnp.zeros(acc_ref.shape, jnp.float32)

    acc_ref[...] += jnp.dot(x_ref[...], w_ref[...],
                            preferred_element_type=jnp.float32)

    @pl.when(k == pl.num_programs(2) - 1)
    def _():
        o_ref[...] = (acc_ref[...] + b_ref[...].astype(jnp.float32)
                      ).astype(o_ref.dtype)


def _linear_tiled_kernel(x_ref, w_ref, o_ref, acc_ref):
    k = pl.program_id(2)

    @pl.when(k == 0)
    def _():
        acc_ref[...] = jnp.zeros(acc_ref.shape, jnp.float32)

    acc_ref[...] += jnp.dot(x_ref[...], w_ref[...],
                            preferred_element_type=jnp.float32)

    @pl.when(k == pl.num_programs(2) - 1)
    def _():
        o_ref[...] = acc_ref[...].astype(o_ref.dtype)


def pallas_linear(x, w_t, b=None, *, tm=512, tn=512, tk=512,
                  resident_weight_bytes=6 * 1024 * 1024):
    """x: (M, K); w_t: (K, N) (transposed nn.Linear weight); b: (N,) or None."""
    M, K = x.shape
    Kw, N = w_t.shape
    assert K == Kw, (K, Kw)
    out_dtype = x.dtype
    itemsize = jnp.dtype(out_dtype).itemsize

    tm = min(tm, _round_up(M, 8))
    Mp = _round_up(M, tm)
    xp = x if Mp == M else jnp.pad(x, ((0, Mp - M), (0, 0)))

    has_bias = b is not None
    b2 = None if b is None else b.reshape(1, N).astype(out_dtype)

    cost_est = pl.CostEstimate(
        flops=2 * M * K * N,
        transcendentals=0,
        bytes_accessed=(M * K + K * N + M * N + (N if has_bias else 0)) * itemsize)
    vmem = _vmem_limit_bytes()

    w_bytes = K * N * jnp.dtype(w_t.dtype).itemsize
    if w_bytes <= resident_weight_bytes:
        # Fast path: whole weight resident in VMEM (constant index_map -> DMA'd
        # once), no K/N tiling, no f32 accumulator scratch.
        in_specs = [pl.BlockSpec((tm, K), lambda i: (i, 0)),
                    pl.BlockSpec((K, N), lambda i: (0, 0))]
        operands = [xp, w_t]
        if has_bias:
            in_specs.append(pl.BlockSpec((1, N), lambda i: (0, 0)))
            operands.append(b2)
        kernel = _linear_resident_bias_kernel if has_bias else _linear_resident_kernel
        out = pl.pallas_call(
            kernel,
            out_shape=jax.ShapeDtypeStruct((Mp, N), out_dtype),
            grid_spec=pltpu.PrefetchScalarGridSpec(
                num_scalar_prefetch=0,
                grid=(Mp // tm,),
                in_specs=in_specs,
                out_specs=pl.BlockSpec((tm, N), lambda i: (i, 0))),
            compiler_params=pltpu.CompilerParams(
                dimension_semantics=("parallel",),
                vmem_limit_bytes=vmem),
            cost_estimate=cost_est,
        )(*operands)
    else:
        # General fallback: tiled over N/K with an f32 VMEM accumulator.
        tn = _pick_tile(N, tn)
        tk = _pick_tile(K, tk)
        in_specs = [pl.BlockSpec((tm, tk), lambda i, j, k: (i, k)),
                    pl.BlockSpec((tk, tn), lambda i, j, k: (k, j))]
        operands = [xp, w_t]
        if has_bias:
            in_specs.append(pl.BlockSpec((1, tn), lambda i, j, k: (0, j)))
            operands.append(b2)
        kernel = _linear_tiled_bias_kernel if has_bias else _linear_tiled_kernel
        out = pl.pallas_call(
            kernel,
            out_shape=jax.ShapeDtypeStruct((Mp, N), out_dtype),
            grid_spec=pltpu.PrefetchScalarGridSpec(
                num_scalar_prefetch=0,
                grid=(Mp // tm, N // tn, K // tk),
                in_specs=in_specs,
                out_specs=pl.BlockSpec((tm, tn), lambda i, j, k: (i, j)),
                scratch_shapes=[pltpu.VMEM((tm, tn), jnp.float32)]),
            compiler_params=pltpu.CompilerParams(
                dimension_semantics=("parallel", "parallel", "arbitrary"),
                vmem_limit_bytes=vmem),
            cost_estimate=cost_est,
        )(*operands)

    return out[:M] if Mp != M else out


# ------------------------------------------------------------------- attention
def _softmax_mha_kernel(q_ref, k_ref, v_ref, o_ref, *, scale, d, hpb, out_approx):
    """Single-kv-step fast path: full softmax over (tq, Skv), no m/l scratch."""
    q = q_ref[0] * scale                       # scale folded into Q once
    k = k_ref[0]
    v = v_ref[0]
    outs = []
    for h in range(hpb):                       # hpb heads packed per 128-lane block
        lo = h * d
        qh = q[:, lo:lo + d]
        kh = k[:, lo:lo + d]
        vh = v[:, lo:lo + d]
        s = jax.lax.dot_general(qh, kh, (((1,), (1,)), ((), ())),
                                preferred_element_type=jnp.float32)
        m = s.max(axis=-1, keepdims=True)
        p = jnp.exp(s - m)
        l = p.sum(axis=-1, keepdims=True)
        o = jax.lax.dot_general(p.astype(vh.dtype), vh, (((1,), (0,)), ((), ())),
                                preferred_element_type=jnp.float32)
        outs.append(o * pl.reciprocal(l, approx=out_approx))
    o_ref[0] = jnp.concatenate(outs, axis=-1).astype(o_ref.dtype)


def _flash_mha_kernel(q_ref, k_ref, v_ref, o_ref, m_sc, l_sc, acc_sc, *,
                      scale, d, hpb, out_approx):
    """Online-softmax (flash) path over the kv grid axis (axis 3)."""
    ki = pl.program_id(3)
    nk = pl.num_programs(3)

    @pl.when(ki == 0)
    def _():
        m_sc[...] = jnp.full(m_sc.shape, -jnp.inf, jnp.float32)
        l_sc[...] = jnp.zeros(l_sc.shape, jnp.float32)
        acc_sc[...] = jnp.zeros(acc_sc.shape, jnp.float32)

    q = q_ref[0] * scale                       # scale folded into Q once
    k = k_ref[0]
    v = v_ref[0]
    for h in range(hpb):
        lo = h * d
        qh = q[:, lo:lo + d]
        kh = k[:, lo:lo + d]
        vh = v[:, lo:lo + d]
        s = jax.lax.dot_general(qh, kh, (((1,), (1,)), ((), ())),
                                preferred_element_type=jnp.float32)
        m_prev = m_sc[h]
        m_new = jnp.maximum(m_prev, s.max(axis=-1, keepdims=True))
        alpha = jnp.exp(m_prev - m_new)
        p = jnp.exp(s - m_new)
        l_sc[h] = alpha * l_sc[h] + p.sum(axis=-1, keepdims=True)
        acc_sc[h] = alpha * acc_sc[h] + jax.lax.dot_general(
            p.astype(vh.dtype), vh, (((1,), (0,)), ((), ())),
            preferred_element_type=jnp.float32)
        m_sc[h] = m_new

    @pl.when(ki == nk - 1)
    def _():
        outs = []
        for h in range(hpb):
            inv = pl.reciprocal(l_sc[h], approx=out_approx)
            outs.append(acc_sc[h] * inv)
        o_ref[0] = jnp.concatenate(outs, axis=-1).astype(o_ref.dtype)


def pallas_mha(q_arr, kv_arr, *, heads, dim_head, scale,
               q_off, k_off, v_off, tq=512, tkv=512):
    """Multi-head attention directly on (B, S, H*D)-layout projections.

    q_arr:  (B, Sq, Wq)  with the H*D query columns starting at q_off.
    kv_arr: (B, Skv, Wkv) with key columns at k_off and value columns at v_off
            (a fused KV — or QKV — projection output; no host-side transposes).
    Output: (B, Sq, H*D) in head-major column order (== reshape_batch_dim_to_heads).
    """
    B, Sq, _ = q_arr.shape
    Skv = kv_arr.shape[1]
    D = dim_head
    inner = heads * D

    # Pack heads so each block is 128 lanes wide (lane-dense loads/stores).
    if D < 128 and 128 % D == 0 and heads % (128 // D) == 0:
        hpb = 128 // D
    else:
        hpb = 1        # TODO(synk): lane-sparse fallback for exotic dim_head
    HW = hpb * D
    HP = heads // hpb
    assert q_off % HW == 0 and k_off % HW == 0 and v_off % HW == 0
    qb, kb, vb = q_off // HW, k_off // HW, v_off // HW

    # kv tiling: exact divisor or the full extent (no kv padding, so no mask needed).
    tkv = _pick_tile(Skv, tkv)
    # q tiling: prefer an exact divisor (no padding); otherwise pad Sq with zeros.
    t_div = _pick_tile(Sq, tq) if Sq % 8 == 0 else 0
    if t_div == Sq or t_div >= min(tq, 128):
        tq, Sq_p, qp = t_div, Sq, q_arr
    else:
        tq = min(tq, _round_up(Sq, 8))
        Sq_p = _round_up(Sq, tq)
        qp = jnp.pad(q_arr, ((0, 0), (0, Sq_p - Sq), (0, 0)))

    out_dtype = q_arr.dtype
    out_approx = jnp.dtype(out_dtype) == jnp.dtype(jnp.bfloat16)
    itemsize = jnp.dtype(out_dtype).itemsize
    cost_est = pl.CostEstimate(
        flops=4 * B * heads * Sq * Skv * D,
        transcendentals=B * heads * Sq * Skv,
        bytes_accessed=B * (2 * Sq * inner + 2 * Skv * inner) * itemsize)
    vmem = _vmem_limit_bytes()

    if Skv // tkv == 1:
        # Typical cross-attention (short context): plain softmax, no scratch.
        out = pl.pallas_call(
            functools.partial(_softmax_mha_kernel, scale=scale, d=D, hpb=hpb,
                              out_approx=out_approx),
            out_shape=jax.ShapeDtypeStruct((B, Sq_p, inner), out_dtype),
            grid_spec=pltpu.PrefetchScalarGridSpec(
                num_scalar_prefetch=0,
                grid=(B, HP, Sq_p // tq),
                in_specs=[
                    pl.BlockSpec((1, tq, HW), lambda b, hp, qi: (b, qi, hp + qb)),
                    pl.BlockSpec((1, Skv, HW), lambda b, hp, qi: (b, 0, hp + kb)),
                    pl.BlockSpec((1, Skv, HW), lambda b, hp, qi: (b, 0, hp + vb)),
                ],
                out_specs=pl.BlockSpec((1, tq, HW), lambda b, hp, qi: (b, qi, hp)),
            ),
            compiler_params=pltpu.CompilerParams(
                dimension_semantics=("parallel", "parallel", "parallel"),
                vmem_limit_bytes=vmem),
            cost_estimate=cost_est,
        )(qp, kv_arr, kv_arr)
    else:
        out = pl.pallas_call(
            functools.partial(_flash_mha_kernel, scale=scale, d=D, hpb=hpb,
                              out_approx=out_approx),
            out_shape=jax.ShapeDtypeStruct((B, Sq_p, inner), out_dtype),
            grid_spec=pltpu.PrefetchScalarGridSpec(
                num_scalar_prefetch=0,
                grid=(B, HP, Sq_p // tq, Skv // tkv),
                in_specs=[
                    pl.BlockSpec((1, tq, HW), lambda b, hp, qi, ki: (b, qi, hp + qb)),
                    pl.BlockSpec((1, tkv, HW), lambda b, hp, qi, ki: (b, ki, hp + kb)),
                    pl.BlockSpec((1, tkv, HW), lambda b, hp, qi, ki: (b, ki, hp + vb)),
                ],
                out_specs=pl.BlockSpec((1, tq, HW), lambda b, hp, qi, ki: (b, qi, hp)),
                scratch_shapes=[
                    pltpu.VMEM((hpb, tq, 1), jnp.float32),   # running max
                    pltpu.VMEM((hpb, tq, 1), jnp.float32),   # running denom
                    pltpu.VMEM((hpb, tq, D), jnp.float32),   # output accumulator
                ],
            ),
            compiler_params=pltpu.CompilerParams(
                dimension_semantics=("parallel", "parallel", "parallel", "arbitrary"),
                vmem_limit_bytes=vmem),
            cost_estimate=cost_est,
        )(qp, kv_arr, kv_arr)

    return out[:, :Sq, :] if Sq_p != Sq else out


# --------------------------------------------------------------------- forward
def cross_attention_forward(hidden_states, context, params, *, heads, dim_head):
    B, Sq, _ = hidden_states.shape
    self_attn = context is None
    ctx = hidden_states if self_attn else context
    Skv = ctx.shape[1]
    inner = heads * dim_head
    scale = dim_head ** -0.5

    x2 = hidden_states.reshape(B * Sq, -1)

    if self_attn:
        # Fused QKV projection: one pass over the activation stream.
        wqkv = jnp.concatenate([params["wq_t"], params["wk_t"], params["wv_t"]], axis=1)
        qkv = pallas_linear(x2, wqkv).reshape(B, Sq, 3 * inner)
        q_arr, kv_arr = qkv, qkv
        q_off, k_off, v_off = 0, inner, 2 * inner
    else:
        # Q projection + fused KV projection over the shared context stream.
        c2 = ctx.reshape(B * Skv, -1)
        wkv = jnp.concatenate([params["wk_t"], params["wv_t"]], axis=1)
        q_arr = pallas_linear(x2, params["wq_t"]).reshape(B, Sq, inner)
        kv_arr = pallas_linear(c2, wkv).reshape(B, Skv, 2 * inner)
        q_off, k_off, v_off = 0, 0, inner

    # Attention reads/writes (B, S, H*D) directly -> no head split/merge transposes.
    oh = pallas_mha(q_arr, kv_arr, heads=heads, dim_head=dim_head, scale=scale,
                    q_off=q_off, k_off=k_off, v_off=v_off)

    # to_out[0] (Linear with bias); to_out[1] Dropout(p=0.0) is identity.
    out = pallas_linear(oh.reshape(B * Sq, inner), params["wo_t"], params["bo"])
    return out.reshape(B, Sq, -1)


# ------------------------------------------------------------------- reference
def cross_attention_reference(hidden_states, context, params, *, heads, dim_head):
    context = hidden_states if context is None else context
    hp = "highest"
    q = jnp.einsum("bsd,df->bsf", hidden_states, params["wq_t"], precision=hp)
    k = jnp.einsum("bsd,df->bsf", context, params["wk_t"], precision=hp)
    v = jnp.einsum("bsd,df->bsf", context, params["wv_t"], precision=hp)
    B, Sq, inner = q.shape
    Skv = k.shape[1]
    scale = dim_head ** -0.5
    qh = q.reshape(B, Sq, heads, dim_head).transpose(0, 2, 1, 3)
    kh = k.reshape(B, Skv, heads, dim_head).transpose(0, 2, 1, 3)
    vh = v.reshape(B, Skv, heads, dim_head).transpose(0, 2, 1, 3)
    s = jnp.einsum("bhqd,bhkd->bhqk", qh, kh, precision=hp) * scale
    p = jax.nn.softmax(s, axis=-1)
    o = jnp.einsum("bhqk,bhkd->bhqd", p, vh, precision=hp)
    o = o.transpose(0, 2, 1, 3).reshape(B, Sq, inner)
    return jnp.einsum("bsd,df->bsf", o, params["wo_t"], precision=hp) + params["bo"]


# ------------------------------------------------------------------------ demo
if __name__ == "__main__":
    heads, dim_head = 8, 64                 # module defaults
    inner_dim = heads * dim_head
    query_dim = 128
    cross_dim = query_dim                   # cross_attention_dim defaults to query_dim

    key = jax.random.PRNGKey(0)
    kx, kc, kq, kk, kv_, ko, kb, kx2 = jax.random.split(key, 8)

    def linear_weight_t(kw, fan_in, fan_out):
        # nn.Linear init: uniform(-1/sqrt(fan_in), 1/sqrt(fan_in)); stored transposed.
        bound = 1.0 / math.sqrt(fan_in)
        return jax.random.uniform(kw, (fan_in, fan_out),
                                  minval=-bound, maxval=bound, dtype=jnp.float32)

    params = {
        "wq_t": linear_weight_t(kq, query_dim, inner_dim),
        "wk_t": linear_weight_t(kk, cross_dim, inner_dim),
        "wv_t": linear_weight_t(kv_, cross_dim, inner_dim),
        "wo_t": linear_weight_t(ko, inner_dim, query_dim),
        "bo": jax.random.uniform(kb, (query_dim,),
                                 minval=-1.0 / math.sqrt(inner_dim),
                                 maxval=1.0 / math.sqrt(inner_dim),
                                 dtype=jnp.float32),
    }

    # --- cross-attention, f32 (fused-KV projection + single-kv-step softmax) ---
    batch, seq_q, seq_kv = 2, 128, 64
    x = jax.random.normal(kx, (batch, seq_q, query_dim), dtype=jnp.float32)
    ctx = jax.random.normal(kc, (batch, seq_kv, cross_dim), dtype=jnp.float32)

    ref = cross_attention_reference(x, ctx, params, heads=heads, dim_head=dim_head)
    out = cross_attention_forward(x, ctx, params, heads=heads, dim_head=dim_head)
    out = jax.block_until_ready(out)
    assert out.shape == (batch, seq_q, query_dim)
    err32 = float(jnp.max(jnp.abs(out - ref)))
    assert jnp.allclose(out, ref, atol=5e-3, rtol=5e-3), f"f32 mismatch: {err32}"

    # --- cross-attention, bf16 (MXU-friendly operands, f32 accumulation) -------
    params_bf16 = jax.tree_util.tree_map(lambda a: a.astype(jnp.bfloat16), params)
    out_bf16 = cross_attention_forward(x.astype(jnp.bfloat16),
                                       ctx.astype(jnp.bfloat16),
                                       params_bf16, heads=heads, dim_head=dim_head)
    out_bf16 = jax.block_until_ready(out_bf16)
    assert out_bf16.dtype == jnp.bfloat16
    err16 = float(jnp.max(jnp.abs(out_bf16.astype(jnp.float32) - ref)))
    assert err16 < 0.1, f"bf16 mismatch: {err16}"

    # --- self-attention (context=None): fused-QKV projection + multi-kv-step
    #     online-softmax (flash) path ------------------------------------------
    xs = jax.random.normal(kx2, (2, 1024, query_dim), dtype=jnp.float32)
    ref_s = cross_attention_reference(xs, None, params, heads=heads, dim_head=dim_head)
    out_s = cross_attention_forward(xs, None, params, heads=heads, dim_head=dim_head)
    out_s = jax.block_until_ready(out_s)
    errs = float(jnp.max(jnp.abs(out_s - ref_s)))
    assert jnp.allclose(out_s, ref_s, atol=5e-3, rtol=5e-3), f"self-attn mismatch: {errs}"

    print("KERNEL_OK")
</pallas_src>

<mosaic_0001>
module attributes {stable_mosaic.version = 11 : i64} {
  func.func @_linear_resident_kernel(%arg0: i32, %arg1: memref<256x128xf32, #tpu.memory_space<vmem>>, %arg2: memref<128x512xf32, #tpu.memory_space<vmem>>, %arg3: memref<256x512xf32, #tpu.memory_space<vmem>>) attributes {dimension_semantics = [#tpu.dimension_semantics<parallel>], iteration_bounds = array<i64: 1>, scalar_prefetch = 0 : i64, scratch_operands = 0 : i64, tpu.core_type = #tpu.core_type<tc>, window_params = [{transform_indices = @transform_0, window_bounds = array<i64: 256, 128>}, {pipeline_mode = #tpu.pipeline_mode<synchronous>, transform_indices = @transform_1, window_bounds = array<i64: 128, 512>}, {transform_indices = @transform_2, window_bounds = array<i64: 256, 512>}]} {
    %c0 = arith.constant 0 : index
    %c0_0 = arith.constant 0 : index
    %0 = vector.load %arg1[%c0, %c0_0] : memref<256x128xf32, #tpu.memory_space<vmem>>, vector<256x128xf32>
    %c0_1 = arith.constant 0 : index
    %c0_2 = arith.constant 0 : index
    %1 = vector.load %arg2[%c0_1, %c0_2] : memref<128x512xf32, #tpu.memory_space<vmem>>, vector<128x512xf32>
    %cst = arith.constant dense<0.000000e+00> : vector<256x512xf32>
    %2 = tpu.matmul %0, %1, %cst {dimension_numbers = #tpu.dot_dimension_numbers<[1], [0], [0], [1], [0, 0, 1, 1], [], []>} : vector<256x128xf32>, vector<128x512xf32>, vector<256x512xf32> -> vector<256x512xf32>
    %c0_3 = arith.constant 0 : index
    %c0_4 = arith.constant 0 : index
    %3 = vector.load %arg3[%c0_3, %c0_4] : memref<256x512xf32, #tpu.memory_space<vmem>>, vector<256x512xf32>
    tpu.vector_store %arg3[%c0_3, %c0_4], %2 {strides = array<i32>} : memref<256x512xf32, #tpu.memory_space<vmem>>, vector<256x512xf32>,
    return
  }
  func.func @transform_0(%arg0: i32) -> (i32, i32) {
    %c0_i32 = arith.constant 0 : i32
    %c0_i32_0 = arith.constant 0 : i32
    return %arg0, %c0_i32 : i32, i32
  }
  func.func @transform_1(%arg0: i32) -> (i32, i32) {
    %c0_i32 = arith.constant 0 : i32
    %c0_i32_0 = arith.constant 0 : i32
    %c0_i32_1 = arith.constant 0 : i32
    return %c0_i32, %c0_i32_0 : i32, i32
  }
  func.func @transform_2(%arg0: i32) -> (i32, i32) {
    %c0_i32 = arith.constant 0 : i32
    %c0_i32_0 = arith.constant 0 : i32
    return %arg0, %c0_i32 : i32, i32
  }
}

</mosaic_0001>

<llo_original>
// kernel: tpu_custom_call.1
$region0: #{tpu_custom_call.1}
  #allocation0 [shape = 'u32[]', space=smem, size = 0x4, offset = 0x4, fixed_abs, tag = 'smem constant byte address 0x4 - core index']
  #allocation1 [shape = 'u32[144,128]{1,0:T(1,128)}', space=vmem, size = 0x12000, scoped, tag = 'internal scratch']
  %s0 = inlined_call_operand.hbm [shape: f32[256,128], index: 0, kind: input, shape index: {}]
  %s1 = inlined_call_operand.hbm [shape: f32[128,512], index: 1, kind: input, shape index: {}]
  %s2 = inlined_call_operand.hbm [shape: f32[256,512], index: 2, kind: output, shape index: {}]
  %s3 = sld [smem:[#allocation0]]
  $region26: #{tpu_custom_call.1} parent=0
    _
  %s5 = ssub.s32 1, %s3
  %s6 = scalar_select 0, %s5, %s3
  $region1: #{tpu_custom_call.1} parent=0
    #allocation2 [shape = 'u8[131072]{0}', space=vmem, size = 0x20000, scoped, tag = 'input window, operand 0, single buffered']
    #allocation3 [shape = 's32[1]{0}', space=sflag, size = 0x4, scoped, tag = 'scoped memory for tpu_custom_call.1']
    #allocation4 [shape = 's32[1]{0}', space=sflag, size = 0x4, scoped, tag = 'scoped memory for tpu_custom_call.1']
    #allocation5 [shape = 'u8[262144]{0}', space=vmem, size = 0x40000, scoped, tag = 'input window, operand 1, single buffered']
    #allocation6 [shape = 's32[1]{0}', space=sflag, size = 0x4, scoped, tag = 'scoped memory for tpu_custom_call.1']
    #allocation7 [shape = 'u8[524288]{0}', space=vmem, size = 0x80000, scoped, tag = 'output window, operand 0, single buffered']
    %7 = vsyncpa [#allocation3], 0
    %8 = vsyncpa [#allocation6], 0
    %9 = vsyncpa [#allocation4], 0
    // Predicated region
    $region2: #{tpu_custom_call.1} parent=1 // pred_check
      _
    $region3: #{tpu_custom_call.1} parent=1 // pred_check_branch
      %11 = sbr.rel (0) target = $region5
    $region4: #{tpu_custom_call.1} parent=1 // pred_region
      %s13 = ssub.s32 4096, 4096
      %14 = vsyncadd [#allocation3], %s13
      %s15 = sshll.u32 [#allocation2], 4
      %s16 = int_to_ptr.vmem [resolvable:$true] %s15
      %21 = dma.hbm_to_vmem [thread:$0]  %s0, 4096, %s16, [#allocation3], 128, 128, 8
    $region5: #{tpu_custom_call.1} parent=1 // pred_fallthru
      _
    // Predicated region
    $region6: #{tpu_custom_call.1} parent=1 // pred_check
      _
    $region7: #{tpu_custom_call.1} parent=1 // pred_check_branch
      %23 = sbr.rel (0) target = $region9
    $region8: #{tpu_custom_call.1} parent=1 // pred_region
      %s25 = ssub.s32 8192, 8192
      %26 = vsyncadd [#allocation6], %s25
      %s27 = sshll.u32 [#allocation5], 4
      %s28 = int_to_ptr.vmem [resolvable:$true] %s27
      %33 = dma.hbm_to_vmem [thread:$0]  %s1, 8192, %s28, [#allocation6], 512, 512, 32
    $region9: #{tpu_custom_call.1} parent=1 // pred_fallthru
      _
    // Predicated region
    $region10: #{tpu_custom_call.1} parent=1 // pred_check
      _
    $region11: #{tpu_custom_call.1} parent=1 // pred_check_branch
      %35 = sbr.rel (0) target = $region13
    $region12: #{tpu_custom_call.1} parent=1 // pred_region
      %36 = dma.done [#allocation3], 4096
    $region13: #{tpu_custom_call.1} parent=1 // pred_fallthru
      _
    // Predicated region
    $region14: #{tpu_custom_call.1} parent=1 // pred_check
      _
    $region15: #{tpu_custom_call.1} parent=1 // pred_check_branch
      %38 = sbr.rel (0) target = $region17
    $region16: #{tpu_custom_call.1} parent=1 // pred_region
      %39 = dma.done [#allocation6], 8192
    $region17: #{tpu_custom_call.1} parent=1 // pred_fallthru
      _
    %v40 = vld [vmem:[#allocation2] sm:$0xff]
    %v41 = vld [vmem:[#allocation2 + $0x8] sm:$0xff]
    %v42 = vld [vmem:[#allocation2 + $0x10] sm:$0xff]
    %v43 = vld [vmem:[#allocation2 + $0x18] sm:$0xff]
    %v44 = vld [vmem:[#allocation2 + $0x20] sm:$0xff]
    %v45 = vld [vmem:[#allocation2 + $0x28] sm:$0xff]
    %v46 = vld [vmem:[#allocation2 + $0x30] sm:$0xff]
    %v47 = vld [vmem:[#allocation2 + $0x38] sm:$0xff]
    %v48 = vld [vmem:[#allocation2 + $0x40] sm:$0xff]
    %v49 = vld [vmem:[#allocation2 + $0x48] sm:$0xff]
    %v50 = vld [vmem:[#allocation2 + $0x50] sm:$0xff]
    %v51 = vld [vmem:[#allocation2 + $0x58] sm:$0xff]
    %v52 = vld [vmem:[#allocation2 + $0x60] sm:$0xff]
    %v53 = vld [vmem:[#allocation2 + $0x68] sm:$0xff]
    %v54 = vld [vmem:[#allocation2 + $0x70] sm:$0xff]
    %v55 = vld [vmem:[#allocation2 + $0x78] sm:$0xff]
    %v56 = vld [vmem:[#allocation2 + $0x80] sm:$0xff]
    %v57 = vld [vmem:[#allocation2 + $0x88] sm:$0xff]
    %v58 = vld [vmem:[#allocation2 + $0x90] sm:$0xff]
    %v59 = vld [vmem:[#allocation2 + $0x98] sm:$0xff]
    %v60 = vld [vmem:[#allocation2 + $0xa0] sm:$0xff]
    %v61 = vld [vmem:[#allocation2 + $0xa8] sm:$0xff]
    %v62 = vld [vmem:[#allocation2 + $0xb0] sm:$0xff]
    %v63 = vld [vmem:[#allocation2 + $0xb8] sm:$0xff]
    %v64 = vld [vmem:[#allocation2 + $0xc0] sm:$0xff]
    %v65 = vld [vmem:[#allocation2 + $0xc8] sm:$0xff]
    %v66 = vld [vmem:[#allocation2 + $0xd0] sm:$0xff]
    %v67 = vld [vmem:[#allocation2 + $0xd8] sm:$0xff]
    %v68 = vld [vmem:[#allocation2 + $0xe0] sm:$0xff]
    %v69 = vld [vmem:[#allocation2 + $0xe8] sm:$0xff]
    %v70 = vld [vmem:[#allocation2 + $0xf0] sm:$0xff]
    %v71 = vld [vmem:[#allocation2 + $0xf8] sm:$0xff]
    %v72 = vld [vmem:[#allocation5] sm:$0xff]
    %v73 = vld [vmem:[#allocation5 + $0x8] sm:$0xff]
    %v74 = vld [vmem:[#allocation5 + $0x10] sm:$0xff]
    %v75 = vld [vmem:[#allocation5 + $0x18] sm:$0xff]
    %v76 = vld [vmem:[#allocation5 + $0x20] sm:$0xff]
    %v77 = vld [vmem:[#allocation5 + $0x28] sm:$0xff]
    %v78 = vld [vmem:[#allocation5 + $0x30] sm:$0xff]
    %v79 = vld [vmem:[#allocation5 + $0x38] sm:$0xff]
    %v80 = vld [vmem:[#allocation5 + $0x40] sm:$0xff]
    %v81 = vld [vmem:[#allocation5 + $0x48] sm:$0xff]
    %v82 = vld [vmem:[#allocation5 + $0x50] sm:$0xff]
    %v83 = vld [vmem:[#allocation5 + $0x58] sm:$0xff]
    %v84 = vld [vmem:[#allocation5 + $0x60] sm:$0xff]
    %v85 = vld [vmem:[#allocation5 + $0x68] sm:$0xff]
    %v86 = vld [vmem:[#allocation5 + $0x70] sm:$0xff]
    %v87 = vld [vmem:[#allocation5 + $0x78] sm:$0xff]
    %v88 = vld [vmem:[#allocation5 + $0x80] sm:$0xff]
    %v89 = vld [vmem:[#allocation5 + $0x88] sm:$0xff]
    %v90 = vld [vmem:[#allocation5 + $0x90] sm:$0xff]
    %v91 = vld [vmem:[#allocation5 + $0x98] sm:$0xff]
    %v92 = vld [vmem:[#allocation5 + $0xa0] sm:$0xff]
    %v93 = vld [vmem:[#allocation5 + $0xa8] sm:$0xff]
    %v94 = vld [vmem:[#allocation5 + $0xb0] sm:$0xff]
    %v95 = vld [vmem:[#allocation5 + $0xb8] sm:$0xff]
    %v96 = vld [vmem:[#allocation5 + $0xc0] sm:$0xff]
    %v97 = vld [vmem:[#allocation5 + $0xc8] sm:$0xff]
    %v98 = vld [vmem:[#allocation5 + $0xd0] sm:$0xff]
    %v99 = vld [vmem:[#allocation5 + $0xd8] sm:$0xff]
    %v100 = vld [vmem:[#allocation5 + $0xe0] sm:$0xff]
    %v101 = vld [vmem:[#allocation5 + $0xe8] sm:$0xff]
    %v102 = vld [vmem:[#allocation5 + $0xf0] sm:$0xff]
    %v103 = vld [vmem:[#allocation5 + $0xf8] sm:$0xff]
    %v104 = vld [vmem:[#allocation5 + $0x100] sm:$0xff]
    %v105 = vld [vmem:[#allocation5 + $0x108] sm:$0xff]
    %v106 = vld [vmem:[#allocation5 + $0x110] sm:$0xff]
    %v107 = vld [vmem:[#allocation5 + $0x118] sm:$0xff]
    %v108 = vld [vmem:[#allocation5 + $0x120] sm:$0xff]
    %v109 = vld [vmem:[#allocation5 + $0x128] sm:$0xff]
    %v110 = vld [vmem:[#allocation5 + $0x130] sm:$0xff]
    %v111 = vld [vmem:[#allocation5 + $0x138] sm:$0xff]
    %v112 = vld [vmem:[#allocation5 + $0x140] sm:$0xff]
    %v113 = vld [vmem:[#allocation5 + $0x148] sm:$0xff]
    %v114 = vld [vmem:[#allocation5 + $0x150] sm:$0xff]
    %v115 = vld [vmem:[#allocation5 + $0x158] sm:$0xff]
    %v116 = vld [vmem:[#allocation5 + $0x160] sm:$0xff]
    %v117 = vld [vmem:[#allocation5 + $0x168] sm:$0xff]
    %v118 = vld [vmem:[#allocation5 + $0x170] sm:$0xff]
    %v119 = vld [vmem:[#allocation5 + $0x178] sm:$0xff]
    %v120 = vld [vmem:[#allocation5 + $0x180] sm:$0xff]
    %v121 = vld [vmem:[#allocation5 + $0x188] sm:$0xff]
    %v122 = vld [vmem:[#allocation5 + $0x190] sm:$0xff]
    %v123 = vld [vmem:[#allocation5 + $0x198] sm:$0xff]
    %v124 = vld [vmem:[#allocation5 + $0x1a0] sm:$0xff]
    %v125 = vld [vmem:[#allocation5 + $0x1a8] sm:$0xff]
    %v126 = vld [vmem:[#allocation5 + $0x1b0] sm:$0xff]
    %v127 = vld [vmem:[#allocation5 + $0x1b8] sm:$0xff]
    %v128 = vld [vmem:[#allocation5 + $0x1c0] sm:$0xff]
    %v129 = vld [vmem:[#allocation5 + $0x1c8] sm:$0xff]
    %v130 = vld [vmem:[#allocation5 + $0x1d0] sm:$0xff]
    %v131 = vld [vmem:[#allocation5 + $0x1d8] sm:$0xff]
    %v132 = vld [vmem:[#allocation5 + $0x1e0] sm:$0xff]
    %v133 = vld [vmem:[#allocation5 + $0x1e8] sm:$0xff]
    %v134 = vld [vmem:[#allocation5 + $0x1f0] sm:$0xff]
    %v135 = vld [vmem:[#allocation5 + $0x1f8] sm:$0xff]
    %136 = vmatprep.subr.mxu0 %v133
    %137 = vmatpush1.msra.mxu0 %v132
    %138 = vmatprep.subr.mxu0 %v129
    %139 = vmatpush1.msra.mxu0 %v128
    %140 = vmatprep.subr.mxu0 %v125
    %141 = vmatpush1.msra.mxu0 %v124
    %142 = vmatprep.subr.mxu0 %v121
    %143 = vmatpush1.msra.mxu0 %v120
    %144 = vmatprep.subr.mxu0 %v117
    %145 = vmatpush1.msra.mxu0 %v116
    %146 = vmatprep.subr.mxu0 %v113
    %147 = vmatpush1.msra.mxu0 %v112
    %148 = vmatprep.subr.mxu0 %v109
    %149 = vmatpush1.msra.mxu0 %v108
    %150 = vmatprep.subr.mxu0 %v105
    %151 = vmatpush1.msra.mxu0 %v104
    %152 = vmatprep.subr.mxu0 %v101
    %153 = vmatpush1.msra.mxu0 %v100
    %154 = vmatprep.subr.mxu0 %v97
    %155 = vmatpush1.msra.mxu0 %v96
    %156 = vmatprep.subr.mxu0 %v93
    %157 = vmatpush1.msra.mxu0 %v92
    %158 = vmatprep.subr.mxu0 %v89
    %159 = vmatpush1.msra.mxu0 %v88
    %160 = vmatprep.subr.mxu0 %v85
    %161 = vmatpush1.msra.mxu0 %v84
    %162 = vmatprep.subr.mxu0 %v81
    %163 = vmatpush1.msra.mxu0 %v80
    %164 = vmatprep.subr.mxu0 %v77
    %165 = vmatpush1.msra.mxu0 %v76
    %166 = vmatprep.subr.mxu0 %v73
    %167 = vmatpush1.msra.mxu0 %v72
    %168 = vmatprep.subr.mxu0 0.0
    %169 = vmatpush2.msra.mxu0 0.0
    %170 = vmatprep.subr.mxu0 0.0
    %171 = vmatpush2.msra.mxu0 0.0
    %172 = vmatprep.subr.mxu0 0.0
    %173 = vmatpush2.msra.mxu0 0.0
    %174 = vmatprep.subr.mxu0 0.0
    %175 = vmatpush2.msra.mxu0 0.0
    %176 = vmatprep.subr.mxu0 0.0
    %177 = vmatpush2.msra.mxu0 0.0
    %178 = vmatprep.subr.mxu0 0.0
    %179 = vmatpush2.msra.mxu0 0.0
    %180 = vmatprep.subr.mxu0 0.0
    %181 = vmatpush2.msra.mxu0 0.0
    %182 = vmatprep.subr.mxu0 0.0
    %183 = vmatpush2.msra.mxu0 0.0
    %184 = vmatprep.subr.mxu0 0.0
    %185 = vmatpush2.msra.mxu0 0.0
    %186 = vmatprep.subr.mxu0 0.0
    %187 = vmatpush2.msra.mxu0 0.0
    %188 = vmatprep.subr.mxu0 0.0
    %189 = vmatpush2.msra.mxu0 0.0
    %190 = vmatprep.subr.mxu0 0.0
    %191 = vmatpush2.msra.mxu0 0.0
    %192 = vmatprep.subr.mxu0 0.0
    %193 = vmatpush2.msra.mxu0 0.0
    %194 = vmatprep.subr.mxu0 0.0
    %195 = vmatpush2.msra.mxu0 0.0
    %196 = vmatprep.subr.mxu0 0.0
    %197 = vmatpush2.msra.mxu0 0.0
    %198 = vmatprep.subr.mxu0 0.0
    %199 = vmatpush2.msra.mxu0 0.0
    %200 = vmatprep.mubr.f32.mxu0 0.0
    %201 = vmatmul.mubr.f32.gmra.mxu0 %v40
    %v202 = vpop.f32.mrf.mxu0
    %v203 = vadd.f32 0.0, %v202
    %v204 = vpop.f32.mrf.mxu0
    %v205 = vadd.f32 0.0, %v204
    %206 = vmatprep.mubr.f32.mxu0 0.0
    %207 = vmatmul.mubr.f32.gmra.mxu0 %v41
    %v208 = vpop.f32.mrf.mxu0
    %v209 = vadd.f32 0.0, %v208
    %v210 = vpop.f32.mrf.mxu0
    %v211 = vadd.f32 0.0, %v210
    %212 = vmatprep.mubr.f32.mxu0 0.0
    %213 = vmatmul.mubr.f32.gmra.mxu0 %v42
    %v214 = vpop.f32.mrf.mxu0
    %v215 = vadd.f32 0.0, %v214
    %v216 = vpop.f32.mrf.mxu0
    %v217 = vadd.f32 0.0, %v216
    %218 = vmatprep.mubr.f32.mxu0 0.0
    %219 = vmatmul.mubr.f32.gmra.mxu0 %v43
    %v220 = vpop.f32.mrf.mxu0
    %v221 = vadd.f32 0.0, %v220
    %v222 = vpop.f32.mrf.mxu0
    %v223 = vadd.f32 0.0, %v222
    %224 = vmatprep.mubr.f32.mxu0 0.0
    %225 = vmatmul.mubr.f32.gmra.mxu0 %v44
    %v226 = vpop.f32.mrf.mxu0
    %v227 = vadd.f32 0.0, %v226
    %v228 = vpop.f32.mrf.mxu0
    %v229 = vadd.f32 0.0, %v228
    %230 = vmatprep.mubr.f32.mxu0 0.0
    %231 = vmatmul.mubr.f32.gmra.mxu0 %v45
    %v232 = vpop.f32.mrf.mxu0
    %v233 = vadd.f32 0.0, %v232
    %v234 = vpop.f32.mrf.mxu0
    %v235 = vadd.f32 0.0, %v234
    %236 = vmatprep.mubr.f32.mxu0 0.0
    %237 = vmatmul.mubr.f32.gmra.mxu0 %v46
    %v238 = vpop.f32.mrf.mxu0
    %v239 = vadd.f32 0.0, %v238
    %v240 = vpop.f32.mrf.mxu0
    %v241 = vadd.f32 0.0, %v240
    %242 = vmatprep.mubr.f32.mxu0 0.0
    %243 = vmatmul.mubr.f32.gmra.mxu0 %v47
    %v244 = vpop.f32.mrf.mxu0
    %v245 = vadd.f32 0.0, %v244
    %v246 = vpop.f32.mrf.mxu0
    %v247 = vadd.f32 0.0, %v246
    %248 = vmatprep.mubr.f32.mxu0 0.0
    %249 = vmatmul.mubr.f32.gmra.mxu0 %v48
    %v250 = vpop.f32.mrf.mxu0
    %v251 = vadd.f32 0.0, %v250
    %v252 = vpop.f32.mrf.mxu0
    %v253 = vadd.f32 0.0, %v252
    %254 = vmatprep.mubr.f32.mxu0 0.0
    %255 = vmatmul.mubr.f32.gmra.mxu0 %v49
    %v256 = vpop.f32.mrf.mxu0
    %v257 = vadd.f32 0.0, %v256
    %v258 = vpop.f32.mrf.mxu0
    %v259 = vadd.f32 0.0, %v258
    %260 = vmatprep.mubr.f32.mxu0 0.0
    %261 = vmatmul.mubr.f32.gmra.mxu0 %v50
    %v262 = vpop.f32.mrf.mxu0
    %v263 = vadd.f32 0.0, %v262
    %v264 = vpop.f32.mrf.mxu0
    %v265 = vadd.f32 0.0, %v264
    %266 = vmatprep.mubr.f32.mxu0 0.0
    %267 = vmatmul.mubr.f32.gmra.mxu0 %v51
    %v268 = vpop.f32.mrf.mxu0
    %v269 = vadd.f32 0.0, %v268
    %v270 = vpop.f32.mrf.mxu0
    %v271 = vadd.f32 0.0, %v270
    %272 = vmatprep.mubr.f32.mxu0 0.0
    %273 = vmatmul.mubr.f32.gmra.mxu0 %v52
    %v274 = vpop.f32.mrf.mxu0
    %v275 = vadd.f32 0.0, %v274
    %v276 = vpop.f32.mrf.mxu0
    %v277 = vadd.f32 0.0, %v276
    %278 = vmatprep.mubr.f32.mxu0 0.0
    %279 = vmatmul.mubr.f32.gmra.mxu0 %v53
    %v280 = vpop.f32.mrf.mxu0
    %v281 = vadd.f32 0.0, %v280
    %v282 = vpop.f32.mrf.mxu0
    %v283 = vadd.f32 0.0, %v282
    %284 = vmatprep.mubr.f32.mxu0 0.0
    %285 = vmatmul.mubr.f32.gmra.mxu0 %v54
    %v286 = vpop.f32.mrf.mxu0
    %v287 = vadd.f32 0.0, %v286
    %v288 = vpop.f32.mrf.mxu0
    %v289 = vadd.f32 0.0, %v288
    %290 = vmatprep.mubr.f32.mxu0 0.0
    %291 = vmatmul.mubr.f32.gmra.mxu0 %v55
    %v292 = vpop.f32.mrf.mxu0
    %v293 = vadd.f32 0.0, %v292
    %v294 = vpop.f32.mrf.mxu0
    %v295 = vadd.f32 0.0, %v294
    %296 = vmatprep.mubr.f32.mxu0 0.0
    %297 = vmatmul.mubr.f32.gmra.mxu0 %v56
    %v298 = vpop.f32.mrf.mxu0
    %v299 = vadd.f32 0.0, %v298
    %v300 = vpop.f32.mrf.mxu0
    %v301 = vadd.f32 0.0, %v300
    %302 = vmatprep.mubr.f32.mxu0 0.0
    %303 = vmatmul.mubr.f32.gmra.mxu0 %v57
    %v304 = vpop.f32.mrf.mxu0
    %v305 = vadd.f32 0.0, %v304
    %v306 = vpop.f32.mrf.mxu0
    %v307 = vadd.f32 0.0, %v306
    %308 = vmatprep.mubr.f32.mxu0 0.0
    %309 = vmatmul.mubr.f32.gmra.mxu0 %v58
    %v310 = vpop.f32.mrf.mxu0
    %v311 = vadd.f32 0.0, %v310
    %v312 = vpop.f32.mrf.mxu0
    %v313 = vadd.f32 0.0, %v312
    %314 = vmatprep.mubr.f32.mxu0 0.0
    %315 = vmatmul.mubr.f32.gmra.mxu0 %v59
    %v316 = vpop.f32.mrf.mxu0
    %v317 = vadd.f32 0.0, %v316
    %v318 = vpop.f32.mrf.mxu0
    %v319 = vadd.f32 0.0, %v318
    %320 = vmatprep.mubr.f32.mxu0 0.0
    %321 = vmatmul.mubr.f32.gmra.mxu0 %v60
    %v322 = vpop.f32.mrf.mxu0
    %v323 = vadd.f32 0.0, %v322
    %v324 = vpop.f32.mrf.mxu0
    %v325 = vadd.f32 0.0, %v324
    %326 = vmatprep.mubr.f32.mxu0 0.0
    %327 = vmatmul.mubr.f32.gmra.mxu0 %v61
    %v328 = vpop.f32.mrf.mxu0
    %v329 = vadd.f32 0.0, %v328
    %v330 = vpop.f32.mrf.mxu0
    %v331 = vadd.f32 0.0, %v330
    %332 = vmatprep.mubr.f32.mxu0 0.0
    %333 = vmatmul.mubr.f32.gmra.mxu0 %v62
    %v334 = vpop.f32.mrf.mxu0
    %v335 = vadd.f32 0.0, %v334
    %v336 = vpop.f32.mrf.mxu0
    %v337 = vadd.f32 0.0, %v336
    %338 = vmatprep.mubr.f32.mxu0 0.0
    %339 = vmatmul.mubr.f32.gmra.mxu0 %v63
    %v340 = vpop.f32.mrf.mxu0
    %v341 = vadd.f32 0.0, %v340
    %v342 = vpop.f32.mrf.mxu0
    %v343 = vadd.f32 0.0, %v342
    %344 = vmatprep.mubr.f32.mxu0 0.0
    %345 = vmatmul.mubr.f32.gmra.mxu0 %v64
    %v346 = vpop.f32.mrf.mxu0
    %v347 = vadd.f32 0.0, %v346
    %v348 = vpop.f32.mrf.mxu0
    %v349 = vadd.f32 0.0, %v348
    %350 = vmatprep.mubr.f32.mxu0 0.0
    %351 = vmatmul.mubr.f32.gmra.mxu0 %v65
    %v352 = vpop.f32.mrf.mxu0
    %v353 = vadd.f32 0.0, %v352
    %v354 = vpop.f32.mrf.mxu0
    %v355 = vadd.f32 0.0, %v354
    %356 = vmatprep.mubr.f32.mxu0 0.0
    %357 = vmatmul.mubr.f32.gmra.mxu0 %v66
    %v358 = vpop.f32.mrf.mxu0
    %v359 = vadd.f32 0.0, %v358
    %v360 = vpop.f32.mrf.mxu0
    %v361 = vadd.f32 0.0, %v360
    %362 = vmatprep.mubr.f32.mxu0 0.0
    %363 = vmatmul.mubr.f32.gmra.mxu0 %v67
    %v364 = vpop.f32.mrf.mxu0
    %v365 = vadd.f32 0.0, %v364
    %v366 = vpop.f32.mrf.mxu0
    %v367 = vadd.f32 0.0, %v366
    %368 = vmatprep.mubr.f32.mxu0 0.0
    %369 = vmatmul.mubr.f32.gmra.mxu0 %v68
    %v370 = vpop.f32.mrf.mxu0
    %v371 = vadd.f32 0.0, %v370
    %v372 = vpop.f32.mrf.mxu0
    %v373 = vadd.f32 0.0, %v372
    %374 = vmatprep.mubr.f32.mxu0 0.0
    %375 = vmatmul.mubr.f32.gmra.mxu0 %v69
    %v376 = vpop.f32.mrf.mxu0
    %v377 = vadd.f32 0.0, %v376
    %v378 = vpop.f32.mrf.mxu0
    %v379 = vadd.f32 0.0, %v378
    %380 = vmatprep.mubr.f32.mxu0 0.0
    %381 = vmatmul.mubr.f32.gmra.mxu0 %v70
    %v382 = vpop.f32.mrf.mxu0
    %v383 = vadd.f32 0.0, %v382
    %v384 = vpop.f32.mrf.mxu0
    %v385 = vadd.f32 0.0, %v384
    %386 = vmatprep.mubr.f32.mxu0 0.0
    %387 = vmatmul.mubr.f32.gmra.mxu0 %v71
    %v388 = vpop.f32.mrf.mxu0
    %v389 = vadd.f32 0.0, %v388
    %v390 = vpop.f32.mrf.mxu0
    %v391 = vadd.f32 0.0, %v390
    %392 = vdwg.mxu0
    %393 = vmatprep.subr.mxu0 %v135
    %394 = vmatpush1.msra.mxu0 %v134
    %395 = vmatprep.subr.mxu0 %v131
    %396 = vmatpush1.msra.mxu0 %v130
    %397 = vmatprep.subr.mxu0 %v127
    %398 = vmatpush1.msra.mxu0 %v126
    %399 = vmatprep.subr.mxu0 %v123
    %400 = vmatpush1.msra.mxu0 %v122
    %401 = vmatprep.subr.mxu0 %v119
    %402 = vmatpush1.msra.mxu0 %v118
    %403 = vmatprep.subr.mxu0 %v115
    %404 = vmatpush1.msra.mxu0 %v114
    %405 = vmatprep.subr.mxu0 %v111
    %406 = vmatpush1.msra.mxu0 %v110
    %407 = vmatprep.subr.mxu0 %v107
    %408 = vmatpush1.msra.mxu0 %v106
    %409 = vmatprep.subr.mxu0 %v103
    %410 = vmatpush1.msra.mxu0 %v102
    %411 = vmatprep.subr.mxu0 %v99
    %412 = vmatpush1.msra.mxu0 %v98
    %413 = vmatprep.subr.mxu0 %v95
    %414 = vmatpush1.msra.mxu0 %v94
    %415 = vmatprep.subr.mxu0 %v91
    %416 = vmatpush1.msra.mxu0 %v90
    %417 = vmatprep.subr.mxu0 %v87
    %418 = vmatpush1.msra.mxu0 %v86
    %419 = vmatprep.subr.mxu0 %v83
    %420 = vmatpush1.msra.mxu0 %v82
    %421 = vmatprep.subr.mxu0 %v79
    %422 = vmatpush1.msra.mxu0 %v78
    %423 = vmatprep.subr.mxu0 %v75
    %424 = vmatpush1.msra.mxu0 %v74
    %425 = vmatprep.subr.mxu0 0.0
    %426 = vmatpush2.msra.mxu0 0.0
    %427 = vmatprep.subr.mxu0 0.0
    %428 = vmatpush2.msra.mxu0 0.0
    %429 = vmatprep.subr.mxu0 0.0
    %430 = vmatpush2.msra.mxu0 0.0
    %431 = vmatprep.subr.mxu0 0.0
    %432 = vmatpush2.msra.mxu0 0.0
    %433 = vmatprep.subr.mxu0 0.0
    %434 = vmatpush2.msra.mxu0 0.0
    %435 = vmatprep.subr.mxu0 0.0
    %436 = vmatpush2.msra.mxu0 0.0
    %437 = vmatprep.subr.mxu0 0.0
    %438 = vmatpush2.msra.mxu0 0.0
    %439 = vmatprep.subr.mxu0 0.0
    %440 = vmatpush2.msra.mxu0 0.0
    %441 = vmatprep.subr.mxu0 0.0
    %442 = vmatpush2.msra.mxu0 0.0
    %443 = vmatprep.subr.mxu0 0.0
    %444 = vmatpush2.msra.mxu0 0.0
    %445 = vmatprep.subr.mxu0 0.0
    %446 = vmatpush2.msra.mxu0 0.0
    %447 = vmatprep.subr.mxu0 0.0
    %448 = vmatpush2.msra.mxu0 0.0
    %449 = vmatprep.subr.mxu0 0.0
    %450 = vmatpush2.msra.mxu0 0.0
    %451 = vmatprep.subr.mxu0 0.0
    %452 = vmatpush2.msra.mxu0 0.0
    %453 = vmatprep.subr.mxu0 0.0
    %454 = vmatpush2.msra.mxu0 0.0
    %455 = vmatprep.subr.mxu0 0.0
    %456 = vmatpush2.msra.mxu0 0.0
    %457 = vmatprep.mubr.f32.mxu0 0.0
    %458 = vmatmul.mubr.f32.gmra.mxu0 %v40
    %v459 = vpop.f32.mrf.mxu0
    %v460 = vadd.f32 0.0, %v459
    %v461 = vpop.f32.mrf.mxu0
    %v462 = vadd.f32 0.0, %v461
    %463 = vmatprep.mubr.f32.mxu0 0.0
    %464 = vmatmul.mubr.f32.gmra.mxu0 %v41
    %v465 = vpop.f32.mrf.mxu0
    %v466 = vadd.f32 0.0, %v465
    %v467 = vpop.f32.mrf.mxu0
    %v468 = vadd.f32 0.0, %v467
    %469 = vmatprep.mubr.f32.mxu0 0.0
    %470 = vmatmul.mubr.f32.gmra.mxu0 %v42
    %v471 = vpop.f32.mrf.mxu0
    %v472 = vadd.f32 0.0, %v471
    %v473 = vpop.f32.mrf.mxu0
    %v474 = vadd.f32 0.0, %v473
    %475 = vmatprep.mubr.f32.mxu0 0.0
    %476 = vmatmul.mubr.f32.gmra.mxu0 %v43
    %v477 = vpop.f32.mrf.mxu0
    %v478 = vadd.f32 0.0, %v477
    %v479 = vpop.f32.mrf.mxu0
    %v480 = vadd.f32 0.0, %v479
    %481 = vmatprep.mubr.f32.mxu0 0.0
    %482 = vmatmul.mubr.f32.gmra.mxu0 %v44
    %v483 = vpop.f32.mrf.mxu0
    %v484 = vadd.f32 0.0, %v483
    %v485 = vpop.f32.mrf.mxu0
    %v486 = vadd.f32 0.0, %v485
    %487 = vmatprep.mubr.f32.mxu0 0.0
    %488 = vmatmul.mubr.f32.gmra.mxu0 %v45
    %v489 = vpop.f32.mrf.mxu0
    %v490 = vadd.f32 0.0, %v489
    %v491 = vpop.f32.mrf.mxu0
    %v492 = vadd.f32 0.0, %v491
    %493 = vmatprep.mubr.f32.mxu0 0.0
    %494 = vmatmul.mubr.f32.gmra.mxu0 %v46
    %v495 = vpop.f32.mrf.mxu0
    %v496 = vadd.f32 0.0, %v495
    %v497 = vpop.f32.mrf.mxu0
    %v498 = vadd.f32 0.0, %v497
    %499 = vmatprep.mubr.f32.mxu0 0.0
    %500 = vmatmul.mubr.f32.gmra.mxu0 %v47
    %v501 = vpop.f32.mrf.mxu0
    %v502 = vadd.f32 0.0, %v501
    %v503 = vpop.f32.mrf.mxu0
    %v504 = vadd.f32 0.0, %v503
    %505 = vmatprep.mubr.f32.mxu0 0.0
    %506 = vmatmul.mubr.f32.gmra.mxu0 %v48
    %v507 = vpop.f32.mrf.mxu0
    %v508 = vadd.f32 0.0, %v507
    %v509 = vpop.f32.mrf.mxu0
    %v510 = vadd.f32 0.0, %v509
    %511 = vmatprep.mubr.f32.mxu0 0.0
    %512 = vmatmul.mubr.f32.gmra.mxu0 %v49
    %v513 = vpop.f32.mrf.mxu0
    %v514 = vadd.f32 0.0, %v513
    %v515 = vpop.f32.mrf.mxu0
    %v516 = vadd.f32 0.0, %v515
    %517 = vmatprep.mubr.f32.mxu0 0.0
    %518 = vmatmul.mubr.f32.gmra.mxu0 %v50
    %v519 = vpop.f32.mrf.mxu0
    %v520 = vadd.f32 0.0, %v519
    %v521 = vpop.f32.mrf.mxu0
    %v522 = vadd.f32 0.0, %v521
    %523 = vmatprep.mubr.f32.mxu0 0.0
    %524 = vmatmul.mubr.f32.gmra.mxu0 %v51
    %v525 = vpop.f32.mrf.mxu0
    %v526 = vadd.f32 0.0, %v525
    %v527 = vpop.f32.mrf.mxu0
    %v528 = vadd.f32 0.0, %v527
    %529 = vmatprep.mubr.f32.mxu0 0.0
    %530 = vmatmul.mubr.f32.gmra.mxu0 %v52
    %v531 = vpop.f32.mrf.mxu0
    %v532 = vadd.f32 0.0, %v531
    %v533 = vpop.f32.mrf.mxu0
    %v534 = vadd.f32 0.0, %v533
    %535 = vmatprep.mubr.f32.mxu0 0.0
    %536 = vmatmul.mubr.f32.gmra.mxu0 %v53
    %v537 = vpop.f32.mrf.mxu0
    %v538 = vadd.f32 0.0, %v537
    %v539 = vpop.f32.mrf.mxu0
    %v540 = vadd.f32 0.0, %v539
    %541 = vmatprep.mubr.f32.mxu0 0.0
    %542 = vmatmul.mubr.f32.gmra.mxu0 %v54
    %v543 = vpop.f32.mrf.mxu0
    %v544 = vadd.f32 0.0, %v543
    %v545 = vpop.f32.mrf.mxu0
    %v546 = vadd.f32 0.0, %v545
    %547 = vmatprep.mubr.f32.mxu0 0.0
    %548 = vmatmul.mubr.f32.gmra.mxu0 %v55
    %v549 = vpop.f32.mrf.mxu0
    %v550 = vadd.f32 0.0, %v549
    %v551 = vpop.f32.mrf.mxu0
    %v552 = vadd.f32 0.0, %v551
    %553 = vmatprep.mubr.f32.mxu0 0.0
    %554 = vmatmul.mubr.f32.gmra.mxu0 %v56
    %v555 = vpop.f32.mrf.mxu0
    %v556 = vadd.f32 0.0, %v555
    %v557 = vpop.f32.mrf.mxu0
    %v558 = vadd.f32 0.0, %v557
    %559 = vmatprep.mubr.f32.mxu0 0.0
    %560 = vmatmul.mubr.f32.gmra.mxu0 %v57
    %v561 = vpop.f32.mrf.mxu0
    %v562 = vadd.f32 0.0, %v561
    %v563 = vpop.f32.mrf.mxu0
    %v564 = vadd.f32 0.0, %v563
    %565 = vmatprep.mubr.f32.mxu0 0.0
    %566 = vmatmul.mubr.f32.gmra.mxu0 %v58
    %v567 = vpop.f32.mrf.mxu0
    %v568 = vadd.f32 0.0, %v567
    %v569 = vpop.f32.mrf.mxu0
    %v570 = vadd.f32 0.0, %v569
    %571 = vmatprep.mubr.f32.mxu0 0.0
    %572 = vmatmul.mubr.f32.gmra.mxu0 %v59
    %v573 = vpop.f32.mrf.mxu0
    %v574 = vadd.f32 0.0, %v573
    %v575 = vpop.f32.mrf.mxu0
    %v576 = vadd.f32 0.0, %v575
    %577 = vmatprep.mubr.f32.mxu0 0.0
    %578 = vmatmul.mubr.f32.gmra.mxu0 %v60
    %v579 = vpop.f32.mrf.mxu0
    %v580 = vadd.f32 0.0, %v579
    %v581 = vpop.f32.mrf.mxu0
    %v582 = vadd.f32 0.0, %v581
    %583 = vmatprep.mubr.f32.mxu0 0.0
    %584 = vmatmul.mubr.f32.gmra.mxu0 %v61
    %v585 = vpop.f32.mrf.mxu0
    %v586 = vadd.f32 0.0, %v585
    %v587 = vpop.f32.mrf.mxu0
    %v588 = vadd.f32 0.0, %v587
    %589 = vmatprep.mubr.f32.mxu0 0.0
    %590 = vmatmul.mubr.f32.gmra.mxu0 %v62
    %v591 = vpop.f32.mrf.mxu0
    %v592 = vadd.f32 0.0, %v591
    %v593 = vpop.f32.mrf.mxu0
    %v594 = vadd.f32 0.0, %v593
    %595 = vmatprep.mubr.f32.mxu0 0.0
    %596 = vmatmul.mubr.f32.gmra.mxu0 %v63
    %v597 = vpop.f32.mrf.mxu0
    %v598 = vadd.f32 0.0, %v597
    %v599 = vpop.f32.mrf.mxu0
    %v600 = vadd.f32 0.0, %v599
    %601 = vmatprep.mubr.f32.mxu0 0.0
    %602 = vmatmul.mubr.f32.gmra.mxu0 %v64
    %v603 = vpop.f32.mrf.mxu0
    %v604 = vadd.f32 0.0, %v603
    %v605 = vpop.f32.mrf.mxu0
    %v606 = vadd.f32 0.0, %v605
    %607 = vmatprep.mubr.f32.mxu0 0.0
    %608 = vmatmul.mubr.f32.gmra.mxu0 %v65
    %v609 = vpop.f32.mrf.mxu0
    %v610 = vadd.f32 0.0, %v609
    %v611 = vpop.f32.mrf.mxu0
    %v612 = vadd.f32 0.0, %v611
    %613 = vmatprep.mubr.f32.mxu0 0.0
    %614 = vmatmul.mubr.f32.gmra.mxu0 %v66
    %v615 = vpop.f32.mrf.mxu0
    %v616 = vadd.f32 0.0, %v615
    %v617 = vpop.f32.mrf.mxu0
    %v618 = vadd.f32 0.0, %v617
    %619 = vmatprep.mubr.f32.mxu0 0.0
    %620 = vmatmul.mubr.f32.gmra.mxu0 %v67
    %v621 = vpop.f32.mrf.mxu0
    %v622 = vadd.f32 0.0, %v621
    %v623 = vpop.f32.mrf.mxu0
    %v624 = vadd.f32 0.0, %v623
    %625 = vmatprep.mubr.f32.mxu0 0.0
    %626 = vmatmul.mubr.f32.gmra.mxu0 %v68
    %v627 = vpop.f32.mrf.mxu0
    %v628 = vadd.f32 0.0, %v627
    %v629 = vpop.f32.mrf.mxu0
    %v630 = vadd.f32 0.0, %v629
    %631 = vmatprep.mubr.f32.mxu0 0.0
    %632 = vmatmul.mubr.f32.gmra.mxu0 %v69
    %v633 = vpop.f32.mrf.mxu0
    %v634 = vadd.f32 0.0, %v633
    %v635 = vpop.f32.mrf.mxu0
    %v636 = vadd.f32 0.0, %v635
    %637 = vmatprep.mubr.f32.mxu0 0.0
    %638 = vmatmul.mubr.f32.gmra.mxu0 %v70
    %v639 = vpop.f32.mrf.mxu0
    %v640 = vadd.f32 0.0, %v639
    %v641 = vpop.f32.mrf.mxu0
    %v642 = vadd.f32 0.0, %v641
    %643 = vmatprep.mubr.f32.mxu0 0.0
    %644 = vmatmul.mubr.f32.gmra.mxu0 %v71
    %v645 = vpop.f32.mrf.mxu0
    %v646 = vadd.f32 0.0, %v645
    %v647 = vpop.f32.mrf.mxu0
    %v648 = vadd.f32 0.0, %v647
    %649 = vdwg.mxu0
    %650 = vst [vmem:[#allocation7] sm:$0xff] %v203
    %651 = vst [vmem:[#allocation7 + $0x8] sm:$0xff] %v205
    %652 = vst [vmem:[#allocation7 + $0x10] sm:$0xff] %v460
    %653 = vst [vmem:[#allocation7 + $0x18] sm:$0xff] %v462
    %654 = vst [vmem:[#allocation7 + $0x20] sm:$0xff] %v209
    %655 = vst [vmem:[#allocation7 + $0x28] sm:$0xff] %v211
    %656 = vst [vmem:[#allocation7 + $0x30] sm:$0xff] %v466
    %657 = vst [vmem:[#allocation7 + $0x38] sm:$0xff] %v468
    %658 = vst [vmem:[#allocation7 + $0x40] sm:$0xff] %v215
    %659 = vst [vmem:[#allocation7 + $0x48] sm:$0xff] %v217
    %660 = vst [vmem:[#allocation7 + $0x50] sm:$0xff] %v472
    %661 = vst [vmem:[#allocation7 + $0x58] sm:$0xff] %v474
    %662 = vst [vmem:[#allocation7 + $0x60] sm:$0xff] %v221
    %663 = vst [vmem:[#allocation7 + $0x68] sm:$0xff] %v223
    %664 = vst [vmem:[#allocation7 + $0x70] sm:$0xff] %v478
    %665 = vst [vmem:[#allocation7 + $0x78] sm:$0xff] %v480
    %666 = vst [vmem:[#allocation7 + $0x80] sm:$0xff] %v227
    %667 = vst [vmem:[#allocation7 + $0x88] sm:$0xff] %v229
    %668 = vst [vmem:[#allocation7 + $0x90] sm:$0xff] %v484
    %669 = vst [vmem:[#allocation7 + $0x98] sm:$0xff] %v486
    %670 = vst [vmem:[#allocation7 + $0xa0] sm:$0xff] %v233
    %671 = vst [vmem:[#allocation7 + $0xa8] sm:$0xff] %v235
    %672 = vst [vmem:[#allocation7 + $0xb0] sm:$0xff] %v490
    %673 = vst [vmem:[#allocation7 + $0xb8] sm:$0xff] %v492
    %674 = vst [vmem:[#allocation7 + $0xc0] sm:$0xff] %v239
    %675 = vst [vmem:[#allocation7 + $0xc8] sm:$0xff] %v241
    %676 = vst [vmem:[#allocation7 + $0xd0] sm:$0xff] %v496
    %677 = vst [vmem:[#allocation7 + $0xd8] sm:$0xff] %v498
    %678 = vst [vmem:[#allocation7 + $0xe0] sm:$0xff] %v245
    %679 = vst [vmem:[#allocation7 + $0xe8] sm:$0xff] %v247
    %680 = vst [vmem:[#allocation7 + $0xf0] sm:$0xff] %v502
    %681 = vst [vmem:[#allocation7 + $0xf8] sm:$0xff] %v504
    %682 = vst [vmem:[#allocation7 + $0x100] sm:$0xff] %v251
    %683 = vst [vmem:[#allocation7 + $0x108] sm:$0xff] %v253
    %684 = vst [vmem:[#allocation7 + $0x110] sm:$0xff] %v508
    %685 = vst [vmem:[#allocation7 + $0x118] sm:$0xff] %v510
    %686 = vst [vmem:[#allocation7 + $0x120] sm:$0xff] %v257
    %687 = vst [vmem:[#allocation7 + $0x128] sm:$0xff] %v259
    %688 = vst [vmem:[#allocation7 + $0x130] sm:$0xff] %v514
    %689 = vst [vmem:[#allocation7 + $0x138] sm:$0xff] %v516
    %690 = vst [vmem:[#allocation7 + $0x140] sm:$0xff] %v263
    %691 = vst [vmem:[#allocation7 + $0x148] sm:$0xff] %v265
    %692 = vst [vmem:[#allocation7 + $0x150] sm:$0xff] %v520
    %693 = vst [vmem:[#allocation7 + $0x158] sm:$0xff] %v522
    %694 = vst [vmem:[#allocation7 + $0x160] sm:$0xff] %v269
    %695 = vst [vmem:[#allocation7 + $0x168] sm:$0xff] %v271
    %696 = vst [vmem:[#allocation7 + $0x170] sm:$0xff] %v526
    %697 = vst [vmem:[#allocation7 + $0x178] sm:$0xff] %v528
    %698 = vst [vmem:[#allocation7 + $0x180] sm:$0xff] %v275
    %699 = vst [vmem:[#allocation7 + $0x188] sm:$0xff] %v277
    %700 = vst [vmem:[#allocation7 + $0x190] sm:$0xff] %v532
    %701 = vst [vmem:[#allocation7 + $0x198] sm:$0xff] %v534
    %702 = vst [vmem:[#allocation7 + $0x1a0] sm:$0xff] %v281
    %703 = vst [vmem:[#allocation7 + $0x1a8] sm:$0xff] %v283
    %704 = vst [vmem:[#allocation7 + $0x1b0] sm:$0xff] %v538
    %705 = vst [vmem:[#allocation7 + $0x1b8] sm:$0xff] %v540
    %706 = vst [vmem:[#allocation7 + $0x1c0] sm:$0xff] %v287
    %707 = vst [vmem:[#allocation7 + $0x1c8] sm:$0xff] %v289
    %708 = vst [vmem:[#allocation7 + $0x1d0] sm:$0xff] %v544
    %709 = vst [vmem:[#allocation7 + $0x1d8] sm:$0xff] %v546
    %710 = vst [vmem:[#allocation7 + $0x1e0] sm:$0xff] %v293
    %711 = vst [vmem:[#allocation7 + $0x1e8] sm:$0xff] %v295
    %712 = vst [vmem:[#allocation7 + $0x1f0] sm:$0xff] %v550
    %713 = vst [vmem:[#allocation7 + $0x1f8] sm:$0xff] %v552
    %714 = vst [vmem:[#allocation7 + $0x200] sm:$0xff] %v299
    %715 = vst [vmem:[#allocation7 + $0x208] sm:$0xff] %v301
    %716 = vst [vmem:[#allocation7 + $0x210] sm:$0xff] %v556
    %717 = vst [vmem:[#allocation7 + $0x218] sm:$0xff] %v558
    %718 = vst [vmem:[#allocation7 + $0x220] sm:$0xff] %v305
    %719 = vst [vmem:[#allocation7 + $0x228] sm:$0xff] %v307
    %720 = vst [vmem:[#allocation7 + $0x230] sm:$0xff] %v562
    %721 = vst [vmem:[#allocation7 + $0x238] sm:$0xff] %v564
    %722 = vst [vmem:[#allocation7 + $0x240] sm:$0xff] %v311
    %723 = vst [vmem:[#allocation7 + $0x248] sm:$0xff] %v313
    %724 = vst [vmem:[#allocation7 + $0x250] sm:$0xff] %v568
    %725 = vst [vmem:[#allocation7 + $0x258] sm:$0xff] %v570
    %726 = vst [vmem:[#allocation7 + $0x260] sm:$0xff] %v317
    %727 = vst [vmem:[#allocation7 + $0x268] sm:$0xff] %v319
    %728 = vst [vmem:[#allocation7 + $0x270] sm:$0xff] %v574
    %729 = vst [vmem:[#allocation7 + $0x278] sm:$0xff] %v576
    %730 = vst [vmem:[#allocation7 + $0x280] sm:$0xff] %v323
    %731 = vst [vmem:[#allocation7 + $0x288] sm:$0xff] %v325
    %732 = vst [vmem:[#allocation7 + $0x290] sm:$0xff] %v580
    %733 = vst [vmem:[#allocation7 + $0x298] sm:$0xff] %v582
    %734 = vst [vmem:[#allocation7 + $0x2a0] sm:$0xff] %v329
    %735 = vst [vmem:[#allocation7 + $0x2a8] sm:$0xff] %v331
    %736 = vst [vmem:[#allocation7 + $0x2b0] sm:$0xff] %v586
    %737 = vst [vmem:[#allocation7 + $0x2b8] sm:$0xff] %v588
    %738 = vst [vmem:[#allocation7 + $0x2c0] sm:$0xff] %v335
    %739 = vst [vmem:[#allocation7 + $0x2c8] sm:$0xff] %v337
    %740 = vst [vmem:[#allocation7 + $0x2d0] sm:$0xff] %v592
    %741 = vst [vmem:[#allocation7 + $0x2d8] sm:$0xff] %v594
    %742 = vst [vmem:[#allocation7 + $0x2e0] sm:$0xff] %v341
    %743 = vst [vmem:[#allocation7 + $0x2e8] sm:$0xff] %v343
    %744 = vst [vmem:[#allocation7 + $0x2f0] sm:$0xff] %v598
    %745 = vst [vmem:[#allocation7 + $0x2f8] sm:$0xff] %v600
    %746 = vst [vmem:[#allocation7 + $0x300] sm:$0xff] %v347
    %747 = vst [vmem:[#allocation7 + $0x308] sm:$0xff] %v349
    %748 = vst [vmem:[#allocation7 + $0x310] sm:$0xff] %v604
    %749 = vst [vmem:[#allocation7 + $0x318] sm:$0xff] %v606
    %750 = vst [vmem:[#allocation7 + $0x320] sm:$0xff] %v353
    %751 = vst [vmem:[#allocation7 + $0x328] sm:$0xff] %v355
    %752 = vst [vmem:[#allocation7 + $0x330] sm:$0xff] %v610
    %753 = vst [vmem:[#allocation7 + $0x338] sm:$0xff] %v612
    %754 = vst [vmem:[#allocation7 + $0x340] sm:$0xff] %v359
    %755 = vst [vmem:[#allocation7 + $0x348] sm:$0xff] %v361
    %756 = vst [vmem:[#allocation7 + $0x350] sm:$0xff] %v616
    %757 = vst [vmem:[#allocation7 + $0x358] sm:$0xff] %v618
    %758 = vst [vmem:[#allocation7 + $0x360] sm:$0xff] %v365
    %759 = vst [vmem:[#allocation7 + $0x368] sm:$0xff] %v367
    %760 = vst [vmem:[#allocation7 + $0x370] sm:$0xff] %v622
    %761 = vst [vmem:[#allocation7 + $0x378] sm:$0xff] %v624
    %762 = vst [vmem:[#allocation7 + $0x380] sm:$0xff] %v371
    %763 = vst [vmem:[#allocation7 + $0x388] sm:$0xff] %v373
    %764 = vst [vmem:[#allocation7 + $0x390] sm:$0xff] %v628
    %765 = vst [vmem:[#allocation7 + $0x398] sm:$0xff] %v630
    %766 = vst [vmem:[#allocation7 + $0x3a0] sm:$0xff] %v377
    %767 = vst [vmem:[#allocation7 + $0x3a8] sm:$0xff] %v379
    %768 = vst [vmem:[#allocation7 + $0x3b0] sm:$0xff] %v634
    %769 = vst [vmem:[#allocation7 + $0x3b8] sm:$0xff] %v636
    %770 = vst [vmem:[#allocation7 + $0x3c0] sm:$0xff] %v383
    %771 = vst [vmem:[#allocation7 + $0x3c8] sm:$0xff] %v385
    %772 = vst [vmem:[#allocation7 + $0x3d0] sm:$0xff] %v640
    %773 = vst [vmem:[#allocation7 + $0x3d8] sm:$0xff] %v642
    %774 = vst [vmem:[#allocation7 + $0x3e0] sm:$0xff] %v389
    %775 = vst [vmem:[#allocation7 + $0x3e8] sm:$0xff] %v391
    %776 = vst [vmem:[#allocation7 + $0x3f0] sm:$0xff] %v646
    %777 = vst [vmem:[#allocation7 + $0x3f8] sm:$0xff] %v648
    // Predicated region
    $region18: #{tpu_custom_call.1} parent=1 // pred_check
      _
    $region19: #{tpu_custom_call.1} parent=1 // pred_check_branch
      %779 = sbr.rel (0) target = $region21
    $region20: #{tpu_custom_call.1} parent=1 // pred_region
      %s781 = ssub.s32 16384, 16384
      %782 = vsyncadd [#allocation4], %s781
      %s783 = sshll.u32 [#allocation7], 4
      %s784 = int_to_ptr.vmem [resolvable:$true] %s783
      %789 = dma.vmem_to_hbm [thread:$0]  %s784, 16384, %s2, [#allocation4], 512, 512, 32
    $region21: #{tpu_custom_call.1} parent=1 // pred_fallthru
      _
    // Predicated region
    $region22: #{tpu_custom_call.1} parent=1 // pred_check
      _
    $region23: #{tpu_custom_call.1} parent=1 // pred_check_branch
      %791 = sbr.rel (0) target = $region25
    $region24: #{tpu_custom_call.1} parent=1 // pred_region
      %792 = dma.done [#allocation4], 16384
    $region25: #{tpu_custom_call.1} parent=1 // pred_fallthru
      _
    %793 = vsyncpa [#allocation3], 1
    %794 = vsyncpa [#allocation6], 1
    %795 = vsyncpa [#allocation4], 1

</llo_original>
